<compile_context>
chip_gen: v7x
topology: tpu7x:2x2x1
jax: 0.10.0
libtpu: 0.0.40
codegen_flags: <defaults>
</compile_context>

<pallas_src>
import jax
import jax.numpy as jnp
from jax.experimental import pallas as pl
from jax.experimental.pallas import tpu as pltpu


def _chomp_vmem_staged(x2, start: int, t_out: int):
    """Contiguous-read VMEM-staged path for short rows (sub-HBM-burst t_out)."""
    r_total, t = x2.shape
    itemsize = x2.dtype.itemsize

    # ~4 MiB input staging tile; double-buffered in + out stays <= ~16 MiB.
    stage_bytes = 4 * 1024 * 1024
    tile_r = max(8, ((stage_bytes // (t * itemsize)) // 8) * 8)  # sublane aligned
    tile_r = min(tile_r, r_total)                                # or full extent
    grid_r = pl.cdiv(r_total, tile_r)

    def kernel(x_ref, o_ref):
        # Static slice of the staged slab; the lane shift rides the free
        # XLU/VPU slots since the kernel is HBM-bandwidth bound.
        o_ref[...] = x_ref[:, pl.ds(start, t_out)]

    return pl.pallas_call(
        kernel,
        out_shape=jax.ShapeDtypeStruct((r_total, t_out), x2.dtype),
        grid_spec=pltpu.PrefetchScalarGridSpec(
            num_scalar_prefetch=0,
            grid=(grid_r,),
            in_specs=[pl.BlockSpec((tile_r, t), lambda i: (i, 0))],
            out_specs=pl.BlockSpec((tile_r, t_out), lambda i: (i, 0)),
        ),
        compiler_params=pltpu.CompilerParams(
            dimension_semantics=("parallel",),
        ),
        cost_estimate=pl.CostEstimate(
            flops=0,
            transcendentals=0,
            bytes_accessed=r_total * (t + t_out) * itemsize,
        ),
    )(x2)


def _chomp_hbm_dma(x2, start: int, t_out: int):
    """Direct HBM->HBM strided-DMA path for long rows."""
    r_total, t = x2.shape
    itemsize = x2.dtype.itemsize

    # ~16 MiB per grid step amortizes the ~0.35us step + wait/start bubble;
    # floor the grid at 4 and round to an even count so v7x's 2 TCs stay
    # balanced; tiles are balanced so the last tile is nearly full.
    target_bytes = 16 * 1024 * 1024
    total_bytes = r_total * t_out * itemsize
    grid_req = max(4, pl.cdiv(total_bytes, target_bytes))
    grid_req += grid_req % 2                 # round up to even
    grid_r = min(grid_req, r_total)
    tile_r = pl.cdiv(r_total, grid_r)
    grid_r = pl.cdiv(r_total, tile_r)
    rem = r_total - (grid_r - 1) * tile_r    # rows in the last tile (1..tile_r)

    max_copies = 4                           # outstanding DMAs per grid step

    def kernel(x_hbm, o_hbm, sem):
        i = pl.program_id(0)
        row0 = i * tile_r

        def issue(nrows):
            # Up to 4 concurrent sub-copies. Split along rows when possible;
            # when the tile has few rows, split along time as well so the
            # DMA issue/completion latency stays hidden. All semaphore state
            # is local to this grid step -> safe under "parallel".
            n_r = min(nrows, max_copies)
            n_t = max(1, min(t_out, max_copies // n_r))
            r_sizes = [nrows // n_r + (1 if k < nrows % n_r else 0)
                       for k in range(n_r)]
            t_sizes = [t_out // n_t + (1 if k < t_out % n_t else 0)
                       for k in range(n_t)]
            copies = []
            r_off = 0
            for rs in r_sizes:
                t_off = 0
                for ts in t_sizes:
                    copies.append(pltpu.make_async_copy(
                        x_hbm.at[pl.ds(row0 + r_off, rs),
                                 pl.ds(start + t_off, ts)],
                        o_hbm.at[pl.ds(row0 + r_off, rs),
                                 pl.ds(t_off, ts)],
                        sem.at[len(copies)]))
                    t_off += ts
                r_off += rs
            for cp in copies:
                cp.start()
            for cp in copies:
                cp.wait()

        if rem == tile_r:
            # Even split: every grid step moves a full tile.
            issue(tile_r)
        else:
            @pl.when(i < grid_r - 1)
            def _():
                issue(tile_r)

            @pl.when(i == grid_r - 1)
            def _():
                issue(rem)

    return pl.pallas_call(
        kernel,
        out_shape=jax.ShapeDtypeStruct((r_total, t_out), x2.dtype),
        grid_spec=pltpu.PrefetchScalarGridSpec(
            num_scalar_prefetch=0,
            grid=(grid_r,),
            in_specs=[pl.BlockSpec(memory_space=pl.ANY)],   # raw HBM ref
            out_specs=pl.BlockSpec(memory_space=pl.ANY),    # raw HBM ref
            scratch_shapes=[pltpu.SemaphoreType.DMA((max_copies,))],
        ),
        compiler_params=pltpu.CompilerParams(
            dimension_semantics=("parallel",),
        ),
        cost_estimate=pl.CostEstimate(
            flops=0,
            transcendentals=0,
            bytes_accessed=2 * r_total * t_out * itemsize,
        ),
    )(x2)


def chomp1d(x, chomp_size: int, symm_chomp: bool):
    """Pallas equivalent of Chomp1d.forward for x of shape (N, C, T)."""
    if chomp_size == 0:
        return x
    if symm_chomp:
        assert chomp_size % 2 == 0, "If symmetric chomp, chomp size needs to be even"
        start = chomp_size // 2
    else:
        start = 0

    n, c, t = x.shape
    t_out = t - chomp_size
    assert t_out > 0, "chomp_size must be smaller than the time dimension"

    # Flatten (N, C) -> rows; a contiguous reshape is free for XLA.
    r_total = n * c
    x2 = x.reshape(r_total, t)
    itemsize = x.dtype.itemsize

    if t_out * itemsize < 1024:
        # Per-row contiguous run is below HBM burst granularity: a strided
        # HBM read would collapse bandwidth. Stage full rows through VMEM.
        out2 = _chomp_vmem_staged(x2, start, t_out)
    else:
        # Long rows: pure HBM->HBM strided DMA with the chomp folded into
        # the source slice.
        out2 = _chomp_hbm_dma(x2, start, t_out)

    return out2.reshape(n, c, t_out)


if __name__ == "__main__":
    key = jax.random.PRNGKey(0)

    # --- Small-T cases (VMEM-staged contiguous-read path) ---
    N, C, T = 2, 4, 16
    x = jax.random.normal(key, (N, C, T), dtype=jnp.float32)

    cs_symm = 4
    y_symm = jax.block_until_ready(chomp1d(x, cs_symm, symm_chomp=True))
    ref_symm = x[:, :, cs_symm // 2: T - cs_symm // 2]
    assert y_symm.shape == (N, C, T - cs_symm)
    assert jnp.allclose(y_symm, ref_symm)

    cs_causal = 3
    y_causal = jax.block_until_ready(chomp1d(x, cs_causal, symm_chomp=False))
    ref_causal = x[:, :, : T - cs_causal]
    assert y_causal.shape == (N, C, T - cs_causal)
    assert jnp.allclose(y_causal, ref_causal)

    # chomp_size == 0 passthrough
    y_zero = jax.block_until_ready(chomp1d(x, 0, symm_chomp=False))
    assert jnp.allclose(y_zero, x)

    # --- Large-T cases (HBM->HBM DMA path, even-tile grid) ---
    key2 = jax.random.PRNGKey(0)
    Tb = 4096
    xb = jax.random.normal(key2, (2, 4, Tb), dtype=jnp.float32)
    yb = jax.block_until_ready(chomp1d(xb, 4, symm_chomp=True))
    assert jnp.allclose(yb, xb[:, :, 2: Tb - 2])
    yb2 = jax.block_until_ready(chomp1d(xb, 3, symm_chomp=False))
    assert jnp.allclose(yb2, xb[:, :, : Tb - 3])

    # --- Large-T with uneven last tile (exercises pl.when dual path) ---
    Tc = 2048
    xc = jax.random.normal(jax.random.PRNGKey(0), (2, 5, Tc), dtype=jnp.float32)
    yc = jax.block_until_ready(chomp1d(xc, 4, symm_chomp=True))
    assert jnp.allclose(yc, xc[:, :, 2: Tc - 2])

    print("KERNEL_OK")
</pallas_src>

<mosaic_0001>
module attributes {stable_mosaic.version = 11 : i64} {
  func.func @kernel(%arg0: i32, %arg1: memref<8x16xf32, #tpu.memory_space<vmem>>, %arg2: memref<8x12xf32, #tpu.memory_space<vmem>>) attributes {dimension_semantics = [#tpu.dimension_semantics<parallel>], iteration_bounds = array<i64: 1>, scalar_prefetch = 0 : i64, scratch_operands = 0 : i64, tpu.core_type = #tpu.core_type<tc>, window_params = [{transform_indices = @transform_0, window_bounds = array<i64: 8, 16>}, {transform_indices = @transform_1, window_bounds = array<i64: 8, 12>}]} {
    %c0 = arith.constant 0 : index
    %c2 = arith.constant 2 : index
    %0 = vector.load %arg1[%c0, %c2] : memref<8x16xf32, #tpu.memory_space<vmem>>, vector<8x12xf32>
    %c0_0 = arith.constant 0 : index
    %c0_1 = arith.constant 0 : index
    %1 = vector.load %arg2[%c0_0, %c0_1] : memref<8x12xf32, #tpu.memory_space<vmem>>, vector<8x12xf32>
    tpu.vector_store %arg2[%c0_0, %c0_1], %0 {strides = array<i32>} : memref<8x12xf32, #tpu.memory_space<vmem>>, vector<8x12xf32>,
    return
  }
  func.func @transform_0(%arg0: i32) -> (i32, i32) {
    %c0_i32 = arith.constant 0 : i32
    %c0_i32_0 = arith.constant 0 : i32
    return %arg0, %c0_i32 : i32, i32
  }
  func.func @transform_1(%arg0: i32) -> (i32, i32) {
    %c0_i32 = arith.constant 0 : i32
    %c0_i32_0 = arith.constant 0 : i32
    return %arg0, %c0_i32 : i32, i32
  }
}

</mosaic_0001>

<llo_original>
// kernel: tpu_custom_call.1
$region0: #{tpu_custom_call.1}
  #allocation0 [shape = 'u32[]', space=smem, size = 0x4, offset = 0x4, fixed_abs, tag = 'smem constant byte address 0x4 - core index']
  #allocation1 [shape = 'u32[144,128]{1,0:T(1,128)}', space=vmem, size = 0x12000, scoped, tag = 'internal scratch']
  %s0 = inlined_call_operand.hbm [shape: f32[8,16], index: 0, kind: input, shape index: {}]
  %s1 = inlined_call_operand.hbm [shape: f32[8,12], index: 1, kind: output, shape index: {}]
  %s2 = sld [smem:[#allocation0]]
  $region18: #{tpu_custom_call.1} parent=0
    _
  %s4 = ssub.s32 1, %s2
  %s5 = scalar_select 0, %s4, %s2
  $region1: #{tpu_custom_call.1} parent=0
    #allocation2 [shape = 'u8[4096]{0}', space=vmem, size = 0x1000, scoped, tag = 'input window, operand 0, single buffered']
    #allocation3 [shape = 's32[1]{0}', space=sflag, size = 0x4, scoped, tag = 'scoped memory for tpu_custom_call.1']
    #allocation4 [shape = 's32[1]{0}', space=sflag, size = 0x4, scoped, tag = 'scoped memory for tpu_custom_call.1']
    #allocation5 [shape = 'u8[4096]{0}', space=vmem, size = 0x1000, scoped, tag = 'output window, operand 0, single buffered']
    %6 = vsyncpa [#allocation3], 0
    %7 = vsyncpa [#allocation4], 0
    // Predicated region
    $region2: #{tpu_custom_call.1} parent=1 // pred_check
      _
    $region3: #{tpu_custom_call.1} parent=1 // pred_check_branch
      %9 = sbr.rel (0) target = $region5
    $region4: #{tpu_custom_call.1} parent=1 // pred_region
      %s11 = ssub.s32 128, 128
      %12 = vsyncadd [#allocation3], %s11
      %s14 = sshll.u32 [#allocation2], 4
      %s15 = int_to_ptr.vmem [resolvable:$true] %s14
      %17 = dma.hbm_to_vmem [thread:$0]  %s0, 128, %s15, [#allocation3]
    $region5: #{tpu_custom_call.1} parent=1 // pred_fallthru
      _
    // Predicated region
    $region6: #{tpu_custom_call.1} parent=1 // pred_check
      _
    $region7: #{tpu_custom_call.1} parent=1 // pred_check_branch
      %19 = sbr.rel (0) target = $region9
    $region8: #{tpu_custom_call.1} parent=1 // pred_region
      %20 = dma.done [#allocation3], 128
    $region9: #{tpu_custom_call.1} parent=1 // pred_fallthru
      _
    %v21 = vld [vmem:[#allocation2] sm:$0xff]
    %23 = vrot.lane.b32.xlu0 %v21, 126
    %v24 = vpop.permute.xlu0 %23
    %vm26 = vcmask 97280
    %27 = vst.msk [vmem:[#allocation5] sm:$0xff] %vm26, %v24
    // Predicated region
    $region10: #{tpu_custom_call.1} parent=1 // pred_check
      _
    $region11: #{tpu_custom_call.1} parent=1 // pred_check_branch
      %29 = sbr.rel (0) target = $region13
    $region12: #{tpu_custom_call.1} parent=1 // pred_region
      %s31 = ssub.s32 128, 128
      %32 = vsyncadd [#allocation4], %s31
      %s34 = sshll.u32 [#allocation5], 4
      %s35 = int_to_ptr.vmem [resolvable:$true] %s34
      %37 = dma.vmem_to_hbm [thread:$0]  %s35, 128, %s1, [#allocation4]
    $region13: #{tpu_custom_call.1} parent=1 // pred_fallthru
      _
    // Predicated region
    $region14: #{tpu_custom_call.1} parent=1 // pred_check
      _
    $region15: #{tpu_custom_call.1} parent=1 // pred_check_branch
      %39 = sbr.rel (0) target = $region17
    $region16: #{tpu_custom_call.1} parent=1 // pred_region
      %40 = dma.done [#allocation4], 128
    $region17: #{tpu_custom_call.1} parent=1 // pred_fallthru
      _
    %41 = vsyncpa [#allocation3], 1
    %42 = vsyncpa [#allocation4], 1

</llo_original>
